<compile_context>
chip_gen: v7x
topology: tpu7x:2x2x1
jax: 0.10.0
libtpu: 0.0.40
codegen_flags: <defaults>
</compile_context>

<pallas_src>
import functools

import numpy as np
import jax
import jax.numpy as jnp
from jax.experimental import pallas as pl
from jax.experimental.pallas import tpu as pltpu


def _adaptive_pool_weights(crop_size: int, offset: int, full: int, out_size: int) -> np.ndarray:
    """Pooling matrix (out_size, full): adaptive-avg-pool of the window
    [offset, offset + crop_size) of a length-`full` axis down to `out_size`."""
    w = np.zeros((out_size, full), dtype=np.float32)
    for i in range(out_size):
        start = (i * crop_size) // out_size                       # floor(i*n/O)
        end = ((i + 1) * crop_size + out_size - 1) // out_size    # ceil((i+1)*n/O)
        w[i, offset + start: offset + end] = 1.0 / float(end - start)
    return w


@functools.lru_cache(maxsize=64)
def _pool_weight_tables(params, H, W, S, wc_dtype, wr_dtype):
    """Device-resident weight tables, cached by (cutout params, shapes, dtypes)."""
    wc = np.stack([_adaptive_pool_weights(s, ox, W, S).T for (s, _oy, ox) in params])  # (n, W, S)
    wr = np.stack([_adaptive_pool_weights(s, oy, H, S) for (s, oy, _ox) in params])    # (n, S, H)
    return (jnp.asarray(wc, dtype=wc_dtype), jnp.asarray(wr, dtype=wr_dtype))


def _cutout_kernel(x_ref, wc_ref, wr_ref, o_ref, *, h, tk, stage2_dtype):
    # x_ref : (tk*h, W)    input dtype (bf16 fed natively to the MXU, f32 accumulate)
    # wc_ref: (1, W, S)    input dtype
    # wr_ref: (1, S, h)    stage-2 dtype (f32; bf16 when the input is bf16)
    # o_ref : (1, tk, S, S) output dtype (dtype cast folded into the store)
    tmp = jnp.dot(x_ref[...], wc_ref[0], preferred_element_type=jnp.float32)   # (tk*h, S)
    tmp = tmp.astype(stage2_dtype)
    wr = wr_ref[0]                                                             # (S, h)
    for k in range(tk):  # static unroll; tk is a small B*C tile
        blk = jnp.dot(wr, tmp[k * h:(k + 1) * h, :],
                      preferred_element_type=jnp.float32)                      # (S, S)
        o_ref[0, k] = blk.astype(o_ref.dtype)


def make_cutouts(pixel_values, cutout_params, cut_size, *, force_bc_tile=None):
    """pixel_values: (B, C, H, W). cutout_params: sequence of (size, offsety, offsetx).
    Returns (num_cutouts * B, C, cut_size, cut_size), cutout-major (== torch.cat)."""
    B, C, H, W = pixel_values.shape
    n = len(cutout_params)
    S = int(cut_size)
    K = B * C
    dtype = pixel_values.dtype
    itemsize = np.dtype(dtype).itemsize

    # f32 path for f32 inputs (exact vs the 1e-5 test tolerance); bf16 inputs keep the
    # second matmul in bf16 too (f32 accumulation) for MXU rate / fewer VMEM bytes.
    is_bf16 = np.dtype(dtype) == np.dtype(jnp.bfloat16)
    stage2_dtype = np.dtype(jnp.bfloat16) if is_bf16 else np.dtype(jnp.float32)
    s2_itemsize = stage2_dtype.itemsize

    params_key = tuple((int(s), int(oy), int(ox)) for (s, oy, ox) in cutout_params)
    wc, wr = _pool_weight_tables(params_key, H, W, S, np.dtype(dtype), stage2_dtype)

    # ---- Pick the B*C tile from a VMEM budget (covers v7x's smaller VMEM). ----
    def footprint(tk):
        return (2 * tk * H * W * itemsize          # x block (double buffered)
                + 2 * W * S * itemsize             # Wc block
                + 2 * S * H * s2_itemsize          # Wr block
                + 2 * tk * S * S * itemsize        # output block
                + tk * H * S * (4 + s2_itemsize))  # in-kernel intermediate

    budget = 24 << 20  # headroom under every generation's scoped-VMEM default
    tk = K
    if force_bc_tile is not None:
        tk = int(force_bc_tile)
    elif footprint(K) > budget:
        # Largest tile that fits and keeps x row-blocks sublane-aligned (tk*H % 8 == 0);
        # prefer divisors of K so edge blocks stay whole.
        fitting = [t for t in range(K, 0, -1) if (t * H) % 8 == 0 and footprint(t) <= budget]
        if fitting:
            divisors = [t for t in fitting if K % t == 0]
            tk = divisors[0] if divisors else fitting[0]
        # else: keep tk = K and rely on the raised vmem limit below (rare fallback).
    num_kb = pl.cdiv(K, tk)

    vmem_limit = int(min(max(32 << 20, footprint(tk) * 3 // 2), 96 << 20))

    flops = 2 * n * K * H * W * S + 2 * n * K * S * H * S
    bytes_accessed = (K * H * W * itemsize                                   # x read once
                      + num_kb * n * (W * S * itemsize + S * H * s2_itemsize)
                      + n * K * S * S * itemsize)
    cost = pl.CostEstimate(flops=int(flops), transcendentals=0,
                           bytes_accessed=int(bytes_accessed))

    kernel = functools.partial(_cutout_kernel, h=H, tk=tk,
                               stage2_dtype=jnp.dtype(stage2_dtype) if hasattr(jnp, "dtype") else stage2_dtype)

    x2 = pixel_values.reshape(K * H, W)   # free row-major reshape
    out = pl.pallas_call(
        kernel,
        out_shape=jax.ShapeDtypeStruct((n, K, S, S), dtype),
        grid=(num_kb, n),                 # cutouts fastest -> x block reused across cutouts
        in_specs=[
            pl.BlockSpec((tk * H, W), lambda kj, i: (kj, 0)),
            pl.BlockSpec((1, W, S), lambda kj, i: (i, 0, 0)),
            pl.BlockSpec((1, S, H), lambda kj, i: (i, 0, 0)),
        ],
        out_specs=pl.BlockSpec((1, tk, S, S), lambda kj, i: (i, kj, 0, 0)),
        compiler_params=pltpu.CompilerParams(
            dimension_semantics=("parallel", "parallel"),
            vmem_limit_bytes=vmem_limit),
        cost_estimate=cost,
    )(x2, wc, wr)

    # (n, B*C, S, S) -> (n*B, C, S, S): pure row-major reshape == torch.cat layout.
    return out.reshape(n * B, C, S, S)


def _sample_cutout_params(rng, sideY, sideX, cut_size, cut_power, num_cutouts):
    # Mirrors the torch module's sampling logic (host-side Python ints).
    # TODO(synk): bit-identical torch RNG streams are not reproducible in JAX;
    # the distribution/semantics are identical, the seed stream is not.
    max_size = min(sideX, sideY)
    min_size = min(sideX, sideY, cut_size)
    params = []
    for _ in range(num_cutouts):
        size = int(rng.random() ** cut_power * (max_size - min_size) + min_size)
        offsetx = int(rng.integers(0, sideX - size + 1))
        offsety = int(rng.integers(0, sideY - size + 1))
        params.append((size, offsety, offsetx))
    return params


def _reference(pixel_np, params, cut_size):
    outs = []
    for (size, oy, ox) in params:
        crop = pixel_np[:, :, oy:oy + size, ox:ox + size]
        B, C, h, w = crop.shape
        o = np.zeros((B, C, cut_size, cut_size), np.float32)
        for i in range(cut_size):
            hs, he = (i * h) // cut_size, ((i + 1) * h + cut_size - 1) // cut_size
            for j in range(cut_size):
                ws, we = (j * w) // cut_size, ((j + 1) * w + cut_size - 1) // cut_size
                o[:, :, i, j] = crop[:, :, hs:he, ws:we].mean(axis=(2, 3))
        outs.append(o)
    return np.concatenate(outs, axis=0)


if __name__ == "__main__":
    B, C, H, W = 2, 3, 16, 16
    cut_size, cut_power, num_cutouts = 8, 1.0, 6

    key = jax.random.PRNGKey(0)
    pixel_values = jax.random.uniform(key, (B, C, H, W), dtype=jnp.float32)

    rng = np.random.default_rng(0)  # deterministic cutout size/offset sampling
    params = _sample_cutout_params(rng, H, W, cut_size, cut_power, num_cutouts)

    ref = _reference(np.asarray(pixel_values), params, cut_size)

    # Default path (single B*C block).
    out = make_cutouts(pixel_values, params, cut_size)
    out = jax.block_until_ready(out)
    assert out.shape == (num_cutouts * B, C, cut_size, cut_size)
    np.testing.assert_allclose(np.asarray(out), ref, rtol=1e-5, atol=1e-5)

    # Also exercise the K-tiled path (multiple blocks along B*C, tk divides K).
    out2 = make_cutouts(pixel_values, params, cut_size, force_bc_tile=3)
    out2 = jax.block_until_ready(out2)
    np.testing.assert_allclose(np.asarray(out2), ref, rtol=1e-5, atol=1e-5)

    print("KERNEL_OK")
</pallas_src>

<mosaic_0001>
module attributes {stable_mosaic.version = 11 : i64} {
  func.func @_cutout_kernel(%arg0: i32, %arg1: i32, %arg2: memref<96x16xf32, #tpu.memory_space<vmem>>, %arg3: memref<1x16x8xf32, #tpu.memory_space<vmem>>, %arg4: memref<1x8x16xf32, #tpu.memory_space<vmem>>, %arg5: memref<1x6x8x8xf32, #tpu.memory_space<vmem>>) attributes {dimension_semantics = [#tpu.dimension_semantics<parallel>, #tpu.dimension_semantics<parallel>], iteration_bounds = array<i64: 1, 6>, scalar_prefetch = 0 : i64, scratch_operands = 0 : i64, tpu.core_type = #tpu.core_type<tc>, window_params = [{transform_indices = @transform_0, window_bounds = array<i64: 96, 16>}, {transform_indices = @transform_1, window_bounds = array<i64: 1, 16, 8>}, {transform_indices = @transform_2, window_bounds = array<i64: 1, 8, 16>}, {transform_indices = @transform_3, window_bounds = array<i64: 1, 6, 8, 8>}]} {
    %c0 = arith.constant 0 : index
    %c0_0 = arith.constant 0 : index
    %0 = vector.load %arg2[%c0, %c0_0] : memref<96x16xf32, #tpu.memory_space<vmem>>, vector<96x16xf32>
    %c0_1 = arith.constant 0 : index
    %c0_2 = arith.constant 0 : index
    %c0_3 = arith.constant 0 : index
    %1 = vector.load %arg3[%c0_1, %c0_2, %c0_3] : memref<1x16x8xf32, #tpu.memory_space<vmem>>, vector<1x16x8xf32>
    %2 = vector.shape_cast %1 : vector<1x16x8xf32> to vector<16x8xf32>
    %cst = arith.constant dense<0.000000e+00> : vector<96x8xf32>
    %3 = tpu.matmul %0, %2, %cst {dimension_numbers = #tpu.dot_dimension_numbers<[1], [0], [0], [1], [0, 0, 1, 1], [], []>} : vector<96x16xf32>, vector<16x8xf32>, vector<96x8xf32> -> vector<96x8xf32>
    %c0_4 = arith.constant 0 : index
    %c0_5 = arith.constant 0 : index
    %c0_6 = arith.constant 0 : index
    %4 = vector.load %arg4[%c0_4, %c0_5, %c0_6] : memref<1x8x16xf32, #tpu.memory_space<vmem>>, vector<1x8x16xf32>
    %5 = vector.shape_cast %4 : vector<1x8x16xf32> to vector<8x16xf32>
    %6 = vector.extract_strided_slice %3 {offsets = [0, 0], sizes = [16, 8], strides = [1, 1]} : vector<96x8xf32> to vector<16x8xf32>
    %cst_7 = arith.constant dense<0.000000e+00> : vector<8x8xf32>
    %7 = tpu.matmul %5, %6, %cst_7 {dimension_numbers = #tpu.dot_dimension_numbers<[1], [0], [0], [1], [0, 0, 1, 1], [], []>} : vector<8x16xf32>, vector<16x8xf32>, vector<8x8xf32> -> vector<8x8xf32>
    %c0_8 = arith.constant 0 : index
    %c0_9 = arith.constant 0 : index
    %c0_10 = arith.constant 0 : index
    %c0_11 = arith.constant 0 : index
    %8 = vector.load %arg5[%c0_8, %c0_9, %c0_10, %c0_11] : memref<1x6x8x8xf32, #tpu.memory_space<vmem>>, vector<1x1x8x8xf32>
    %9 = vector.shape_cast %8 : vector<1x1x8x8xf32> to vector<8x8xf32>
    %10 = vector.shape_cast %7 : vector<8x8xf32> to vector<1x1x8x8xf32>
    tpu.vector_store %arg5[%c0_8, %c0_9, %c0_10, %c0_11], %10 {strides = array<i32>} : memref<1x6x8x8xf32, #tpu.memory_space<vmem>>, vector<1x1x8x8xf32>,
    %11 = vector.extract_strided_slice %3 {offsets = [16, 0], sizes = [16, 8], strides = [1, 1]} : vector<96x8xf32> to vector<16x8xf32>
    %cst_12 = arith.constant dense<0.000000e+00> : vector<8x8xf32>
    %12 = tpu.matmul %5, %11, %cst_12 {dimension_numbers = #tpu.dot_dimension_numbers<[1], [0], [0], [1], [0, 0, 1, 1], [], []>} : vector<8x16xf32>, vector<16x8xf32>, vector<8x8xf32> -> vector<8x8xf32>
    %c0_13 = arith.constant 0 : index
    %c1 = arith.constant 1 : index
    %c0_14 = arith.constant 0 : index
    %c0_15 = arith.constant 0 : index
    %13 = vector.load %arg5[%c0_13, %c1, %c0_14, %c0_15] : memref<1x6x8x8xf32, #tpu.memory_space<vmem>>, vector<1x1x8x8xf32>
    %14 = vector.shape_cast %13 : vector<1x1x8x8xf32> to vector<8x8xf32>
    %15 = vector.shape_cast %12 : vector<8x8xf32> to vector<1x1x8x8xf32>
    tpu.vector_store %arg5[%c0_13, %c1, %c0_14, %c0_15], %15 {strides = array<i32>} : memref<1x6x8x8xf32, #tpu.memory_space<vmem>>, vector<1x1x8x8xf32>,
    %16 = vector.extract_strided_slice %3 {offsets = [32, 0], sizes = [16, 8], strides = [1, 1]} : vector<96x8xf32> to vector<16x8xf32>
    %cst_16 = arith.constant dense<0.000000e+00> : vector<8x8xf32>
    %17 = tpu.matmul %5, %16, %cst_16 {dimension_numbers = #tpu.dot_dimension_numbers<[1], [0], [0], [1], [0, 0, 1, 1], [], []>} : vector<8x16xf32>, vector<16x8xf32>, vector<8x8xf32> -> vector<8x8xf32>
    %c0_17 = arith.constant 0 : index
    %c2 = arith.constant 2 : index
    %c0_18 = arith.constant 0 : index
    %c0_19 = arith.constant 0 : index
    %18 = vector.load %arg5[%c0_17, %c2, %c0_18, %c0_19] : memref<1x6x8x8xf32, #tpu.memory_space<vmem>>, vector<1x1x8x8xf32>
    %19 = vector.shape_cast %18 : vector<1x1x8x8xf32> to vector<8x8xf32>
    %20 = vector.shape_cast %17 : vector<8x8xf32> to vector<1x1x8x8xf32>
    tpu.vector_store %arg5[%c0_17, %c2, %c0_18, %c0_19], %20 {strides = array<i32>} : memref<1x6x8x8xf32, #tpu.memory_space<vmem>>, vector<1x1x8x8xf32>,
    %21 = vector.extract_strided_slice %3 {offsets = [48, 0], sizes = [16, 8], strides = [1, 1]} : vector<96x8xf32> to vector<16x8xf32>
    %cst_20 = arith.constant dense<0.000000e+00> : vector<8x8xf32>
    %22 = tpu.matmul %5, %21, %cst_20 {dimension_numbers = #tpu.dot_dimension_numbers<[1], [0], [0], [1], [0, 0, 1, 1], [], []>} : vector<8x16xf32>, vector<16x8xf32>, vector<8x8xf32> -> vector<8x8xf32>
    %c0_21 = arith.constant 0 : index
    %c3 = arith.constant 3 : index
    %c0_22 = arith.constant 0 : index
    %c0_23 = arith.constant 0 : index
    %23 = vector.load %arg5[%c0_21, %c3, %c0_22, %c0_23] : memref<1x6x8x8xf32, #tpu.memory_space<vmem>>, vector<1x1x8x8xf32>
    %24 = vector.shape_cast %23 : vector<1x1x8x8xf32> to vector<8x8xf32>
    %25 = vector.shape_cast %22 : vector<8x8xf32> to vector<1x1x8x8xf32>
    tpu.vector_store %arg5[%c0_21, %c3, %c0_22, %c0_23], %25 {strides = array<i32>} : memref<1x6x8x8xf32, #tpu.memory_space<vmem>>, vector<1x1x8x8xf32>,
    %26 = vector.extract_strided_slice %3 {offsets = [64, 0], sizes = [16, 8], strides = [1, 1]} : vector<96x8xf32> to vector<16x8xf32>
    %cst_24 = arith.constant dense<0.000000e+00> : vector<8x8xf32>
    %27 = tpu.matmul %5, %26, %cst_24 {dimension_numbers = #tpu.dot_dimension_numbers<[1], [0], [0], [1], [0, 0, 1, 1], [], []>} : vector<8x16xf32>, vector<16x8xf32>, vector<8x8xf32> -> vector<8x8xf32>
    %c0_25 = arith.constant 0 : index
    %c4 = arith.constant 4 : index
    %c0_26 = arith.constant 0 : index
    %c0_27 = arith.constant 0 : index
    %28 = vector.load %arg5[%c0_25, %c4, %c0_26, %c0_27] : memref<1x6x8x8xf32, #tpu.memory_space<vmem>>, vector<1x1x8x8xf32>
    %29 = vector.shape_cast %28 : vector<1x1x8x8xf32> to vector<8x8xf32>
    %30 = vector.shape_cast %27 : vector<8x8xf32> to vector<1x1x8x8xf32>
    tpu.vector_store %arg5[%c0_25, %c4, %c0_26, %c0_27], %30 {strides = array<i32>} : memref<1x6x8x8xf32, #tpu.memory_space<vmem>>, vector<1x1x8x8xf32>,
    %31 = vector.extract_strided_slice %3 {offsets = [80, 0], sizes = [16, 8], strides = [1, 1]} : vector<96x8xf32> to vector<16x8xf32>
    %cst_28 = arith.constant dense<0.000000e+00> : vector<8x8xf32>
    %32 = tpu.matmul %5, %31, %cst_28 {dimension_numbers = #tpu.dot_dimension_numbers<[1], [0], [0], [1], [0, 0, 1, 1], [], []>} : vector<8x16xf32>, vector<16x8xf32>, vector<8x8xf32> -> vector<8x8xf32>
    %c0_29 = arith.constant 0 : index
    %c5 = arith.constant 5 : index
    %c0_30 = arith.constant 0 : index
    %c0_31 = arith.constant 0 : index
    %33 = vector.load %arg5[%c0_29, %c5, %c0_30, %c0_31] : memref<1x6x8x8xf32, #tpu.memory_space<vmem>>, vector<1x1x8x8xf32>
    %34 = vector.shape_cast %33 : vector<1x1x8x8xf32> to vector<8x8xf32>
    %35 = vector.shape_cast %32 : vector<8x8xf32> to vector<1x1x8x8xf32>
    tpu.vector_store %arg5[%c0_29, %c5, %c0_30, %c0_31], %35 {strides = array<i32>} : memref<1x6x8x8xf32, #tpu.memory_space<vmem>>, vector<1x1x8x8xf32>,
    return
  }
  func.func @transform_0(%arg0: i32, %arg1: i32) -> (i32, i32) {
    %c0_i32 = arith.constant 0 : i32
    %c0_i32_0 = arith.constant 0 : i32
    return %arg0, %c0_i32 : i32, i32
  }
  func.func @transform_1(%arg0: i32, %arg1: i32) -> (i32, i32, i32) {
    %c0_i32 = arith.constant 0 : i32
    %c0_i32_0 = arith.constant 0 : i32
    %c0_i32_1 = arith.constant 0 : i32
    return %arg1, %c0_i32, %c0_i32_0 : i32, i32, i32
  }
  func.func @transform_2(%arg0: i32, %arg1: i32) -> (i32, i32, i32) {
    %c0_i32 = arith.constant 0 : i32
    %c0_i32_0 = arith.constant 0 : i32
    %c0_i32_1 = arith.constant 0 : i32
    return %arg1, %c0_i32, %c0_i32_0 : i32, i32, i32
  }
  func.func @transform_3(%arg0: i32, %arg1: i32) -> (i32, i32, i32, i32) {
    %c0_i32 = arith.constant 0 : i32
    %c0_i32_0 = arith.constant 0 : i32
    %c0_i32_1 = arith.constant 0 : i32
    return %arg1, %arg0, %c0_i32, %c0_i32_0 : i32, i32, i32, i32
  }
}

</mosaic_0001>

<llo_original>
// kernel: tpu_custom_call.1
$region0: #{tpu_custom_call.1}
  #allocation0 [shape = 'u32[]', space=smem, size = 0x4, offset = 0x4, fixed_abs, tag = 'smem constant byte address 0x4 - core index']
  #allocation1 [shape = 'u32[144,128]{1,0:T(1,128)}', space=vmem, size = 0x12000, scoped, tag = 'internal scratch']
  %s0 = inlined_call_operand.vmem [shape: f32[96,16], index: 0, kind: input, shape index: {}]
  %s1 = inlined_call_operand.vmem [shape: f32[6,16,8], index: 1, kind: input, shape index: {}]
  %s2 = inlined_call_operand.vmem [shape: f32[6,8,16], index: 2, kind: input, shape index: {}]
  %s3 = inlined_call_operand.hbm [shape: f32[6,6,8,8], index: 3, kind: output, shape index: {}]
  %s4 = sld [smem:[#allocation0]]
  $region45: #{tpu_custom_call.1} parent=0
    _
  %s6 = ssub.s32 1, %s4
  %s7 = scalar_select 0, %s6, %s4
  $region1: #{tpu_custom_call.1} parent=0
    #allocation2 [shape = 'u8[49152]{0}', space=vmem, size = 0xc000, scoped, tag = 'output window, operand 0']
    #allocation3 [shape = 's32[2]{0}', space=sflag, size = 0x8, scoped, tag = 'scoped memory for tpu_custom_call.1']
    %8 = vsyncpa [#allocation3], 0
    %s9 = scalar_lea.sflag [#allocation3], 1
    %10 = vsyncpa %s9, 0
    loop: start=0, step=1, limit=8
    $region2: #{tpu_custom_call.1} parent=1 // loop_pre_header
      _
    $region3: #{tpu_custom_call.1} parent=1 // loop_header
      %s12 = sphi 0, %s16
      %p13 = scmp.ge.s32.totalorder %s12, 8
      %s19 = sphi 0, %s31
      %s20 = sphi 0, %s27
      %s21 = sphi 0, %s19
      %s22 = sphi 0, %s20
      %s23 = sphi 0, %s21
      %s24 = sphi 0, %s22
      %s34 = sphi 0, %s36
      %s37 = sphi 0, %s34
      %s38 = sphi 0, %s37
      %s54 = sphi 0, %s38
      %s60 = sphi 0, %s62
      %s63 = sphi 0, %s60
      %s64 = sphi 0, %s63
      %s80 = sphi 0, %s64
      %s86 = sphi 0, %s88
      %s89 = sphi 0, %s86
      %s90 = sphi 0, %s89
      %s106 = sphi 0, %s90
      %s114 = sphi 0, %s116
      %s117 = sphi 0, %s114
      %s118 = sphi 0, %s117
      %s134 = sphi 0, %s118
    $region4: #{tpu_custom_call.1} parent=1 // loop_header_branch
      %15 = sbr.rel (%p13) target = $region8
    $region5: #{tpu_custom_call.1} parent=1 // loop_body
      %s17 = ssub.s32 %s12, 1
      %s18 = ssub.s32 %s12, 2
      %s25 = sadd.s32 1, %s20
      %p26 = scmp.ge.s32.totalorder %s25, 6
      %s27 = scalar_select %p26, 0, %s25
      %s28 = sadd.s32 1, %s19
      %s29 = scalar_select %p26, %s28, %s19
      %p30 = scmp.ge.s32.totalorder %s29, 1
      %s31 = scalar_select %p30, 0, %s29
      %s32 = ssub.s32 %s19, %s31
      %p33 = scmp.eq.s32.totalorder %s32, 0
      %s35 = sadd.s32 %s34, 1
      %s36 = scalar_select %p33, %s34, %s35
      %p39 = pneg %p33
      %p40 = scmp.eq.s32.totalorder %s12, 5
      %p41 = por %p39, %p40
      %p42 = scmp.ne.s32.totalorder %s34, %s37
      %p43 = scmp.eq.s32.totalorder %s12, 0
      %p44 = por %p42, %p43
      %p45 = scmp.ne.s32.totalorder %s34, %s37
      %p46 = scmp.eq.s32.totalorder %s17, 5
      %p47 = por %p45, %p46
      %p48 = scmp.ne.s32.totalorder %s37, %s38
      %p49 = scmp.eq.s32.totalorder %s17, 0
      %p50 = por %p48, %p49
      %p51 = scmp.ne.s32.totalorder %s37, %s38
      %p52 = scmp.eq.s32.totalorder %s18, 5
      %p53 = por %p51, %p52
      %p55 = scmp.ne.s32.totalorder %s38, %s54
      %p56 = scmp.eq.s32.totalorder %s18, 0
      %p57 = por %p55, %p56
      %s58 = ssub.s32 %s20, %s27
      %p59 = scmp.eq.s32.totalorder %s58, 0
      %s61 = sadd.s32 %s60, 1
      %s62 = scalar_select %p59, %s60, %s61
      %p65 = pneg %p59
      %p66 = scmp.eq.s32.totalorder %s12, 5
      %p67 = por %p65, %p66
      %p68 = scmp.ne.s32.totalorder %s60, %s63
      %p69 = scmp.eq.s32.totalorder %s12, 0
      %p70 = por %p68, %p69
      %p71 = scmp.ne.s32.totalorder %s60, %s63
      %p72 = scmp.eq.s32.totalorder %s17, 5
      %p73 = por %p71, %p72
      %p74 = scmp.ne.s32.totalorder %s63, %s64
      %p75 = scmp.eq.s32.totalorder %s17, 0
      %p76 = por %p74, %p75
      %p77 = scmp.ne.s32.totalorder %s63, %s64
      %p78 = scmp.eq.s32.totalorder %s18, 5
      %p79 = por %p77, %p78
      %p81 = scmp.ne.s32.totalorder %s64, %s80
      %p82 = scmp.eq.s32.totalorder %s18, 0
      %p83 = por %p81, %p82
      %s84 = ssub.s32 %s20, %s27
      %p85 = scmp.eq.s32.totalorder %s84, 0
      %s87 = sadd.s32 %s86, 1
      %s88 = scalar_select %p85, %s86, %s87
      %p91 = pneg %p85
      %p92 = scmp.eq.s32.totalorder %s12, 5
      %p93 = por %p91, %p92
      %p94 = scmp.ne.s32.totalorder %s86, %s89
      %p95 = scmp.eq.s32.totalorder %s12, 0
      %p96 = por %p94, %p95
      %p97 = scmp.ne.s32.totalorder %s86, %s89
      %p98 = scmp.eq.s32.totalorder %s17, 5
      %p99 = por %p97, %p98
      %p100 = scmp.ne.s32.totalorder %s89, %s90
      %p101 = scmp.eq.s32.totalorder %s17, 0
      %p102 = por %p100, %p101
      %p103 = scmp.ne.s32.totalorder %s89, %s90
      %p104 = scmp.eq.s32.totalorder %s18, 5
      %p105 = por %p103, %p104
      %p107 = scmp.ne.s32.totalorder %s90, %s106
      %p108 = scmp.eq.s32.totalorder %s18, 0
      %p109 = por %p107, %p108
      %s110 = ssub.s32 %s20, %s27
      %s111 = ssub.s32 %s19, %s31
      %s112 = sor.u32 %s110, %s111
      %p113 = scmp.eq.s32.totalorder %s112, 0
      %s115 = sadd.s32 %s114, 1
      %s116 = scalar_select %p113, %s114, %s115
      %p119 = pneg %p113
      %p120 = scmp.eq.s32.totalorder %s12, 5
      %p121 = por %p119, %p120
      %p122 = scmp.ne.s32.totalorder %s114, %s117
      %p123 = scmp.eq.s32.totalorder %s12, 0
      %p124 = por %p122, %p123
      %p125 = scmp.ne.s32.totalorder %s114, %s117
      %p126 = scmp.eq.s32.totalorder %s17, 5
      %p127 = por %p125, %p126
      %p128 = scmp.ne.s32.totalorder %s117, %s118
      %p129 = scmp.eq.s32.totalorder %s17, 0
      %p130 = por %p128, %p129
      %p131 = scmp.ne.s32.totalorder %s117, %s118
      %p132 = scmp.eq.s32.totalorder %s18, 5
      %p133 = por %p131, %p132
      %p135 = scmp.ne.s32.totalorder %s118, %s134
      %p136 = scmp.eq.s32.totalorder %s18, 0
      %p137 = por %p135, %p136
      %p138 = scmp.le.s32.totalorder 1, %s12
      %p139 = scmp.lt.s32.totalorder %s12, 7
      %p140 = pnand %p138, %p139
      %p141 = pneg %p140
      // Predicated region
      $region9: #{tpu_custom_call.1} parent=5 // pred_check
        _
      $region10: #{tpu_custom_call.1} parent=5 // pred_check_branch
        %143 = sbr.rel (%p140) target = $region12
      $region11: #{tpu_custom_call.1} parent=5 // pred_region
        %s144 = ssub.s32 %s12, 1
        // Predicated region
        $region13: #{tpu_custom_call.1} parent=11 // pred_check
          %p145 = pneg %p50
        $region14: #{tpu_custom_call.1} parent=11 // pred_check_branch
          %147 = sbr.rel (%p145) target = $region16
        $region15: #{tpu_custom_call.1} parent=11 // pred_region
          %s148 = smul.u32 12, %s21
          %p149 = scmp.lt.s32.totalorder %s148, 11
          %s150 = scalar_select %p149, %s148, 11
          %s151 = smul.addr %s150, 8
          %s152 = scalar_lea.vmem %s0, %s151
          %s153 = smul.u32 12, %s21
        $region16: #{tpu_custom_call.1} parent=11 // pred_fallthru
          _
      $region12: #{tpu_custom_call.1} parent=5 // pred_fallthru
        _
      %p154 = scmp.lt.s32.totalorder %s12, 6
      // Predicated region
      $region17: #{tpu_custom_call.1} parent=5 // pred_check
        %p155 = pneg %p154
      $region18: #{tpu_custom_call.1} parent=5 // pred_check_branch
        %157 = sbr.rel (%p155) target = $region20
      $region19: #{tpu_custom_call.1} parent=5 // pred_region
        // Predicated region
        $region21: #{tpu_custom_call.1} parent=19 // pred_check
          %p158 = pneg %p70
        $region22: #{tpu_custom_call.1} parent=19 // pred_check_branch
          %160 = sbr.rel (%p158) target = $region24
        $region23: #{tpu_custom_call.1} parent=19 // pred_region
          %p161 = scmp.lt.s32.totalorder %s20, 5
          %s162 = scalar_select %p161, %s20, 5
          %s163 = smul.addr %s162, 2
          %s164 = smul.addr %s163, 8
          %s165 = scalar_lea.vmem %s1, %s164
        $region24: #{tpu_custom_call.1} parent=19 // pred_fallthru
          _
        // Predicated region
        $region25: #{tpu_custom_call.1} parent=19 // pred_check
          %p166 = pneg %p96
        $region26: #{tpu_custom_call.1} parent=19 // pred_check_branch
          %168 = sbr.rel (%p166) target = $region28
        $region27: #{tpu_custom_call.1} parent=19 // pred_region
          %p169 = scmp.lt.s32.totalorder %s20, 5
          %s170 = scalar_select %p169, %s20, 5
          %s171 = smul.addr %s170, 8
          %s172 = scalar_lea.vmem %s2, %s171
        $region28: #{tpu_custom_call.1} parent=19 // pred_fallthru
          _
      $region20: #{tpu_custom_call.1} parent=5 // pred_fallthru
        _
      %p173 = scmp.le.s32.totalorder 1, %s12
      %p174 = scmp.lt.s32.totalorder %s12, 7
      %p175 = pnand %p173, %p174
      %p176 = pneg %p175
      // Predicated region
      $region29: #{tpu_custom_call.1} parent=5 // pred_check
        _
      $region30: #{tpu_custom_call.1} parent=5 // pred_check_branch
        %178 = sbr.rel (%p175) target = $region32
      $region31: #{tpu_custom_call.1} parent=5 // pred_region
        %s179 = ssub.s32 %s12, 1
        %s180 = smul.u32 12, %s21
        %p181 = scmp.lt.s32.totalorder %s180, 11
        %s182 = scalar_select %p181, %s180, 11
        %s183 = smul.addr %s182, 8
        %s184 = scalar_lea.vmem %s0, %s183
        %p185 = pneg %p50
        %p186 = pneg %p47
        %p187 = scmp.lt.s32.totalorder %s22, 5
        %s188 = scalar_select %p187, %s22, 5
        %s189 = smul.addr %s188, 2
        %s190 = smul.addr %s189, 8
        %s191 = scalar_lea.vmem %s1, %s190
        %p192 = pneg %p76
        %p193 = pneg %p73
        %p194 = scmp.lt.s32.totalorder %s22, 5
        %s195 = scalar_select %p194, %s22, 5
        %s196 = smul.addr %s195, 8
        %s197 = scalar_lea.vmem %s2, %s196
        %p198 = pneg %p102
        %p199 = pneg %p99
        %p200 = pneg %p130
        %p201 = pneg %p127
        %s202 = sand.u32 %s117, 1
        %s203 = scalar_lea.sflag [#allocation3], %s202
        %s204 = sand.u32 %s117, 1
        %s205 = smul.addr %s204, 48
        %s206 = scalar_lea.vmem [#allocation2], %s205
        %s207 = smul.u32 12, %s21
        %p208 = scmp.lt.s32.totalorder %s207, 11
        %s209 = scalar_select %p208, %s207, 11
        %s210 = smul.addr %s209, 8
        %s211 = scalar_lea.vmem %s0, %s210
        %s212 = smul.u32 12, %s21
        %p213 = scmp.lt.s32.totalorder %s22, 5
        %s214 = scalar_select %p213, %s22, 5
        %s215 = smul.addr %s214, 2
        %s216 = smul.addr %s215, 8
        %s217 = scalar_lea.vmem %s1, %s216
        %p218 = scmp.lt.s32.totalorder %s22, 5
        %s219 = scalar_select %p218, %s22, 5
        %s220 = smul.addr %s219, 8
        %s221 = scalar_lea.vmem %s2, %s220
        %s222 = smul.u32 6, %s21
        %v223 = vld [vmem:[%s211] sm:$0xff]
        %v224 = vld [vmem:[%s211 + $0x8] sm:$0xff]
        %v225 = vld [vmem:[%s211 + $0x10] sm:$0xff]
        %v226 = vld [vmem:[%s211 + $0x18] sm:$0xff]
        %v227 = vld [vmem:[%s211 + $0x20] sm:$0xff]
        %v228 = vld [vmem:[%s211 + $0x28] sm:$0xff]
        %v229 = vld [vmem:[%s211 + $0x30] sm:$0xff]
        %v230 = vld [vmem:[%s211 + $0x38] sm:$0xff]
        %v231 = vld [vmem:[%s211 + $0x40] sm:$0xff]
        %v232 = vld [vmem:[%s211 + $0x48] sm:$0xff]
        %v233 = vld [vmem:[%s211 + $0x50] sm:$0xff]
        %v234 = vld [vmem:[%s211 + $0x58] sm:$0xff]
        %v235 = vld [vmem:[%s217] sm:$0xff]
        %v236 = vld [vmem:[%s217 + $0x8] sm:$0xff]
        %vm237 = vcmask 130048
        %v239 = vsel %vm237, %v223, 0
        %v242 = vsel %vm237, %v224, 0
        %v245 = vsel %vm237, %v225, 0
        %v248 = vsel %vm237, %v226, 0
        %v251 = vsel %vm237, %v227, 0
        %v254 = vsel %vm237, %v228, 0
        %v257 = vsel %vm237, %v229, 0
        %v260 = vsel %vm237, %v230, 0
        %v263 = vsel %vm237, %v231, 0
        %v266 = vsel %vm237, %v232, 0
        %v269 = vsel %vm237, %v233, 0
        %v272 = vsel %vm237, %v234, 0
        %274 = vmatprep.subr.mxu0 0.0
        %275 = vmatpush1.msra.mxu0 %v235
        %276 = vmatprep.subr.mxu0 0.0
        %277 = vmatpush1.msra.mxu0 %v236
        %278 = vmatprep.subr.mxu0 0.0
        %279 = vmatpush1.msra.mxu0 0.0
        %280 = vmatprep.subr.mxu0 0.0
        %281 = vmatpush1.msra.mxu0 0.0
        %282 = vmatprep.subr.mxu0 0.0
        %283 = vmatpush1.msra.mxu0 0.0
        %284 = vmatprep.subr.mxu0 0.0
        %285 = vmatpush1.msra.mxu0 0.0
        %286 = vmatprep.subr.mxu0 0.0
        %287 = vmatpush1.msra.mxu0 0.0
        %288 = vmatprep.subr.mxu0 0.0
        %289 = vmatpush1.msra.mxu0 0.0
        %290 = vmatprep.subr.mxu0 0.0
        %291 = vmatpush1.msra.mxu0 0.0
        %292 = vmatprep.subr.mxu0 0.0
        %293 = vmatpush1.msra.mxu0 0.0
        %294 = vmatprep.subr.mxu0 0.0
        %295 = vmatpush1.msra.mxu0 0.0
        %296 = vmatprep.subr.mxu0 0.0
        %297 = vmatpush1.msra.mxu0 0.0
        %298 = vmatprep.subr.mxu0 0.0
        %299 = vmatpush1.msra.mxu0 0.0
        %300 = vmatprep.subr.mxu0 0.0
        %301 = vmatpush1.msra.mxu0 0.0
        %302 = vmatprep.subr.mxu0 0.0
        %303 = vmatpush1.msra.mxu0 0.0
        %304 = vmatprep.subr.mxu0 0.0
        %305 = vmatpush1.msra.mxu0 0.0
        %306 = vmatprep.subr.mxu0 0.0
        %307 = vmatpush1.msra.mxu0 0.0
        %308 = vmatprep.subr.mxu0 0.0
        %309 = vmatpush1.msra.mxu0 0.0
        %310 = vmatprep.subr.mxu0 0.0
        %311 = vmatpush1.msra.mxu0 0.0
        %312 = vmatprep.subr.mxu0 0.0
        %313 = vmatpush1.msra.mxu0 0.0
        %314 = vmatprep.subr.mxu0 0.0
        %315 = vmatpush1.msra.mxu0 0.0
        %316 = vmatprep.subr.mxu0 0.0
        %317 = vmatpush1.msra.mxu0 0.0
        %318 = vmatprep.subr.mxu0 0.0
        %319 = vmatpush1.msra.mxu0 0.0
        %320 = vmatprep.subr.mxu0 0.0
        %321 = vmatpush1.msra.mxu0 0.0
        %322 = vmatprep.subr.mxu0 0.0
        %323 = vmatpush1.msra.mxu0 0.0
        %324 = vmatprep.subr.mxu0 0.0
        %325 = vmatpush1.msra.mxu0 0.0
        %326 = vmatprep.subr.mxu0 0.0
        %327 = vmatpush1.msra.mxu0 0.0
        %328 = vmatprep.subr.mxu0 0.0
        %329 = vmatpush1.msra.mxu0 0.0
        %330 = vmatprep.subr.mxu0 0.0
        %331 = vmatpush1.msra.mxu0 0.0
        %332 = vmatprep.subr.mxu0 0.0
        %333 = vmatpush1.msra.mxu0 0.0
        %334 = vmatprep.subr.mxu0 0.0
        %335 = vmatpush1.msra.mxu0 0.0
        %336 = vmatprep.subr.mxu0 0.0
        %337 = vmatpush1.msra.mxu0 0.0
        %338 = vmatprep.mubr.f32.mxu0 0.0
        %339 = vmatmul.mubr.f32.gmra.mrb[0].mxu0 %v239
        %v340 = vpop.f32.mrb[0].mxu0
        %v341 = vadd.f32 0.0, %v340
        %v342 = vpop.f32.mrb[0].mxu0
        %343 = vmatprep.mubr.f32.mxu0 0.0
        %344 = vmatmul.mubr.f32.gmra.mrb[0].mxu0 %v242
        %v345 = vpop.f32.mrb[0].mxu0
        %v346 = vadd.f32 0.0, %v345
        %v347 = vpop.f32.mrb[0].mxu0
        %348 = vmatprep.mubr.f32.mxu0 0.0
        %349 = vmatmul.mubr.f32.gmra.mrb[0].mxu0 %v245
        %v350 = vpop.f32.mrb[0].mxu0
        %v351 = vadd.f32 0.0, %v350
        %v352 = vpop.f32.mrb[0].mxu0
        %353 = vmatprep.mubr.f32.mxu0 0.0
        %354 = vmatmul.mubr.f32.gmra.mrb[0].mxu0 %v248
        %v355 = vpop.f32.mrb[0].mxu0
        %v356 = vadd.f32 0.0, %v355
        %v357 = vpop.f32.mrb[0].mxu0
        %358 = vmatprep.mubr.f32.mxu0 0.0
        %359 = vmatmul.mubr.f32.gmra.mrb[0].mxu0 %v251
        %v360 = vpop.f32.mrb[0].mxu0
        %v361 = vadd.f32 0.0, %v360
        %v362 = vpop.f32.mrb[0].mxu0
        %363 = vmatprep.mubr.f32.mxu0 0.0
        %364 = vmatmul.mubr.f32.gmra.mrb[0].mxu0 %v254
        %v365 = vpop.f32.mrb[0].mxu0
        %v366 = vadd.f32 0.0, %v365
        %v367 = vpop.f32.mrb[0].mxu0
        %368 = vmatprep.mubr.f32.mxu0 0.0
        %369 = vmatmul.mubr.f32.gmra.mrb[0].mxu0 %v257
        %v370 = vpop.f32.mrb[0].mxu0
        %v371 = vadd.f32 0.0, %v370
        %v372 = vpop.f32.mrb[0].mxu0
        %373 = vmatprep.mubr.f32.mxu0 0.0
        %374 = vmatmul.mubr.f32.gmra.mrb[0].mxu0 %v260
        %v375 = vpop.f32.mrb[0].mxu0
        %v376 = vadd.f32 0.0, %v375
        %v377 = vpop.f32.mrb[0].mxu0
        %378 = vmatprep.mubr.f32.mxu0 0.0
        %379 = vmatmul.mubr.f32.gmra.mrb[0].mxu0 %v263
        %v380 = vpop.f32.mrb[0].mxu0
        %v381 = vadd.f32 0.0, %v380
        %v382 = vpop.f32.mrb[0].mxu0
        %383 = vmatprep.mubr.f32.mxu0 0.0
        %384 = vmatmul.mubr.f32.gmra.mrb[0].mxu0 %v266
        %v385 = vpop.f32.mrb[0].mxu0
        %v386 = vadd.f32 0.0, %v385
        %v387 = vpop.f32.mrb[0].mxu0
        %388 = vmatprep.mubr.f32.mxu0 0.0
        %389 = vmatmul.mubr.f32.gmra.mrb[0].mxu0 %v269
        %v390 = vpop.f32.mrb[0].mxu0
        %v391 = vadd.f32 0.0, %v390
        %v392 = vpop.f32.mrb[0].mxu0
        %393 = vmatprep.mubr.f32.mxu0 0.0
        %394 = vmatmul.mubr.f32.gmra.mrb[0].mxu0 %v272
        %v395 = vpop.f32.mrb[0].mxu0
        %v396 = vadd.f32 0.0, %v395
        %v397 = vpop.f32.mrb[0].mxu0
        %398 = vdwg.mxu0
        %v399 = vld [vmem:[%s221] sm:$0xff]
        %v401 = vsel %vm237, %v399, 0
        %403 = vmatprep.subr.mxu0 0.0
        %404 = vmatpush1.msra.mxu0 %v341
        %405 = vmatprep.subr.mxu0 0.0
        %406 = vmatpush1.msra.mxu0 %v346
        %407 = vmatprep.subr.mxu0 0.0
        %408 = vmatpush1.msra.mxu0 0.0
        %409 = vmatprep.subr.mxu0 0.0
        %410 = vmatpush1.msra.mxu0 0.0
        %411 = vmatprep.subr.mxu0 0.0
        %412 = vmatpush1.msra.mxu0 0.0
        %413 = vmatprep.subr.mxu0 0.0
        %414 = vmatpush1.msra.mxu0 0.0
        %415 = vmatprep.subr.mxu0 0.0
        %416 = vmatpush1.msra.mxu0 0.0
        %417 = vmatprep.subr.mxu0 0.0
        %418 = vmatpush1.msra.mxu0 0.0
        %419 = vmatprep.subr.mxu0 0.0
        %420 = vmatpush1.msra.mxu0 0.0
        %421 = vmatprep.subr.mxu0 0.0
        %422 = vmatpush1.msra.mxu0 0.0
        %423 = vmatprep.subr.mxu0 0.0
        %424 = vmatpush1.msra.mxu0 0.0
        %425 = vmatprep.subr.mxu0 0.0
        %426 = vmatpush1.msra.mxu0 0.0
        %427 = vmatprep.subr.mxu0 0.0
        %428 = vmatpush1.msra.mxu0 0.0
        %429 = vmatprep.subr.mxu0 0.0
        %430 = vmatpush1.msra.mxu0 0.0
        %431 = vmatprep.subr.mxu0 0.0
        %432 = vmatpush1.msra.mxu0 0.0
        %433 = vmatprep.subr.mxu0 0.0
        %434 = vmatpush1.msra.mxu0 0.0
        %435 = vmatprep.subr.mxu0 0.0
        %436 = vmatpush1.msra.mxu0 0.0
        %437 = vmatprep.subr.mxu0 0.0
        %438 = vmatpush1.msra.mxu0 0.0
        %439 = vmatprep.subr.mxu0 0.0
        %440 = vmatpush1.msra.mxu0 0.0
        %441 = vmatprep.subr.mxu0 0.0
        %442 = vmatpush1.msra.mxu0 0.0
        %443 = vmatprep.subr.mxu0 0.0
        %444 = vmatpush1.msra.mxu0 0.0
        %445 = vmatprep.subr.mxu0 0.0
        %446 = vmatpush1.msra.mxu0 0.0
        %447 = vmatprep.subr.mxu0 0.0
        %448 = vmatpush1.msra.mxu0 0.0
        %449 = vmatprep.subr.mxu0 0.0
        %450 = vmatpush1.msra.mxu0 0.0
        %451 = vmatprep.subr.mxu0 0.0
        %452 = vmatpush1.msra.mxu0 0.0
        %453 = vmatprep.subr.mxu0 0.0
        %454 = vmatpush1.msra.mxu0 0.0
        %455 = vmatprep.subr.mxu0 0.0
        %456 = vmatpush1.msra.mxu0 0.0
        %457 = vmatprep.subr.mxu0 0.0
        %458 = vmatpush1.msra.mxu0 0.0
        %459 = vmatprep.subr.mxu0 0.0
        %460 = vmatpush1.msra.mxu0 0.0
        %461 = vmatprep.subr.mxu0 0.0
        %462 = vmatpush1.msra.mxu0 0.0
        %463 = vmatprep.subr.mxu0 0.0
        %464 = vmatpush1.msra.mxu0 0.0
        %465 = vmatprep.subr.mxu0 0.0
        %466 = vmatpush1.msra.mxu0 0.0
        %467 = vmatprep.mubr.f32.mxu0 0.0
        %468 = vmatmul.mubr.f32.gmra.mrb[0].mxu0 %v401
        %v469 = vpop.f32.mrb[0].mxu0
        %v470 = vadd.f32 0.0, %v469
        %v471 = vpop.f32.mrb[0].mxu0
        %472 = vdwg.mxu0
        %vm473 = vcmask 64512
        %474 = vst.msk [vmem:[%s206] sm:$0xff] %vm473, %v470
        %475 = vmatprep.subr.mxu0 0.0
        %476 = vmatpush1.msra.mxu0 %v351
        %477 = vmatprep.subr.mxu0 0.0
        %478 = vmatpush1.msra.mxu0 %v356
        %479 = vmatprep.subr.mxu0 0.0
        %480 = vmatpush1.msra.mxu0 0.0
        %481 = vmatprep.subr.mxu0 0.0
        %482 = vmatpush1.msra.mxu0 0.0
        %483 = vmatprep.subr.mxu0 0.0
        %484 = vmatpush1.msra.mxu0 0.0
        %485 = vmatprep.subr.mxu0 0.0
        %486 = vmatpush1.msra.mxu0 0.0
        %487 = vmatprep.subr.mxu0 0.0
        %488 = vmatpush1.msra.mxu0 0.0
        %489 = vmatprep.subr.mxu0 0.0
        %490 = vmatpush1.msra.mxu0 0.0
        %491 = vmatprep.subr.mxu0 0.0
        %492 = vmatpush1.msra.mxu0 0.0
        %493 = vmatprep.subr.mxu0 0.0
        %494 = vmatpush1.msra.mxu0 0.0
        %495 = vmatprep.subr.mxu0 0.0
        %496 = vmatpush1.msra.mxu0 0.0
        %497 = vmatprep.subr.mxu0 0.0
        %498 = vmatpush1.msra.mxu0 0.0
        %499 = vmatprep.subr.mxu0 0.0
        %500 = vmatpush1.msra.mxu0 0.0
        %501 = vmatprep.subr.mxu0 0.0
        %502 = vmatpush1.msra.mxu0 0.0
        %503 = vmatprep.subr.mxu0 0.0
        %504 = vmatpush1.msra.mxu0 0.0
        %505 = vmatprep.subr.mxu0 0.0
        %506 = vmatpush1.msra.mxu0 0.0
        %507 = vmatprep.subr.mxu0 0.0
        %508 = vmatpush1.msra.mxu0 0.0
        %509 = vmatprep.subr.mxu0 0.0
        %510 = vmatpush1.msra.mxu0 0.0
        %511 = vmatprep.subr.mxu0 0.0
        %512 = vmatpush1.msra.mxu0 0.0
        %513 = vmatprep.subr.mxu0 0.0
        %514 = vmatpush1.msra.mxu0 0.0
        %515 = vmatprep.subr.mxu0 0.0
        %516 = vmatpush1.msra.mxu0 0.0
        %517 = vmatprep.subr.mxu0 0.0
        %518 = vmatpush1.msra.mxu0 0.0
        %519 = vmatprep.subr.mxu0 0.0
        %520 = vmatpush1.msra.mxu0 0.0
        %521 = vmatprep.subr.mxu0 0.0
        %522 = vmatpush1.msra.mxu0 0.0
        %523 = vmatprep.subr.mxu0 0.0
        %524 = vmatpush1.msra.mxu0 0.0
        %525 = vmatprep.subr.mxu0 0.0
        %526 = vmatpush1.msra.mxu0 0.0
        %527 = vmatprep.subr.mxu0 0.0
        %528 = vmatpush1.msra.mxu0 0.0
        %529 = vmatprep.subr.mxu0 0.0
        %530 = vmatpush1.msra.mxu0 0.0
        %531 = vmatprep.subr.mxu0 0.0
        %532 = vmatpush1.msra.mxu0 0.0
        %533 = vmatprep.subr.mxu0 0.0
        %534 = vmatpush1.msra.mxu0 0.0
        %535 = vmatprep.subr.mxu0 0.0
        %536 = vmatpush1.msra.mxu0 0.0
        %537 = vmatprep.subr.mxu0 0.0
        %538 = vmatpush1.msra.mxu0 0.0
        %539 = vmatprep.mubr.f32.mxu0 0.0
        %540 = vmatmul.mubr.f32.gmra.mrb[0].mxu0 %v401
        %v541 = vpop.f32.mrb[0].mxu0
        %v542 = vadd.f32 0.0, %v541
        %v543 = vpop.f32.mrb[0].mxu0
        %544 = vdwg.mxu0
        %s545 = scalar_lea.vmem %s206, 8 [#allocation2]
        %546 = vst.msk [vmem:[%s545] sm:$0xff] %vm473, %v542
        %547 = vmatprep.subr.mxu0 0.0
        %548 = vmatpush1.msra.mxu0 %v361
        %549 = vmatprep.subr.mxu0 0.0
        %550 = vmatpush1.msra.mxu0 %v366
        %551 = vmatprep.subr.mxu0 0.0
        %552 = vmatpush1.msra.mxu0 0.0
        %553 = vmatprep.subr.mxu0 0.0
        %554 = vmatpush1.msra.mxu0 0.0
        %555 = vmatprep.subr.mxu0 0.0
        %556 = vmatpush1.msra.mxu0 0.0
        %557 = vmatprep.subr.mxu0 0.0
        %558 = vmatpush1.msra.mxu0 0.0
        %559 = vmatprep.subr.mxu0 0.0
        %560 = vmatpush1.msra.mxu0 0.0
        %561 = vmatprep.subr.mxu0 0.0
        %562 = vmatpush1.msra.mxu0 0.0
        %563 = vmatprep.subr.mxu0 0.0
        %564 = vmatpush1.msra.mxu0 0.0
        %565 = vmatprep.subr.mxu0 0.0
        %566 = vmatpush1.msra.mxu0 0.0
        %567 = vmatprep.subr.mxu0 0.0
        %568 = vmatpush1.msra.mxu0 0.0
        %569 = vmatprep.subr.mxu0 0.0
        %570 = vmatpush1.msra.mxu0 0.0
        %571 = vmatprep.subr.mxu0 0.0
        %572 = vmatpush1.msra.mxu0 0.0
        %573 = vmatprep.subr.mxu0 0.0
        %574 = vmatpush1.msra.mxu0 0.0
        %575 = vmatprep.subr.mxu0 0.0
        %576 = vmatpush1.msra.mxu0 0.0
        %577 = vmatprep.subr.mxu0 0.0
        %578 = vmatpush1.msra.mxu0 0.0
        %579 = vmatprep.subr.mxu0 0.0
        %580 = vmatpush1.msra.mxu0 0.0
        %581 = vmatprep.subr.mxu0 0.0
        %582 = vmatpush1.msra.mxu0 0.0
        %583 = vmatprep.subr.mxu0 0.0
        %584 = vmatpush1.msra.mxu0 0.0
        %585 = vmatprep.subr.mxu0 0.0
        %586 = vmatpush1.msra.mxu0 0.0
        %587 = vmatprep.subr.mxu0 0.0
        %588 = vmatpush1.msra.mxu0 0.0
        %589 = vmatprep.subr.mxu0 0.0
        %590 = vmatpush1.msra.mxu0 0.0
        %591 = vmatprep.subr.mxu0 0.0
        %592 = vmatpush1.msra.mxu0 0.0
        %593 = vmatprep.subr.mxu0 0.0
        %594 = vmatpush1.msra.mxu0 0.0
        %595 = vmatprep.subr.mxu0 0.0
        %596 = vmatpush1.msra.mxu0 0.0
        %597 = vmatprep.subr.mxu0 0.0
        %598 = vmatpush1.msra.mxu0 0.0
        %599 = vmatprep.subr.mxu0 0.0
        %600 = vmatpush1.msra.mxu0 0.0
        %601 = vmatprep.subr.mxu0 0.0
        %602 = vmatpush1.msra.mxu0 0.0
        %603 = vmatprep.subr.mxu0 0.0
        %604 = vmatpush1.msra.mxu0 0.0
        %605 = vmatprep.subr.mxu0 0.0
        %606 = vmatpush1.msra.mxu0 0.0
        %607 = vmatprep.subr.mxu0 0.0
        %608 = vmatpush1.msra.mxu0 0.0
        %609 = vmatprep.subr.mxu0 0.0
        %610 = vmatpush1.msra.mxu0 0.0
        %611 = vmatprep.mubr.f32.mxu0 0.0
        %612 = vmatmul.mubr.f32.gmra.mrb[0].mxu0 %v401
        %v613 = vpop.f32.mrb[0].mxu0
        %v614 = vadd.f32 0.0, %v613
        %v615 = vpop.f32.mrb[0].mxu0
        %616 = vdwg.mxu0
        %s617 = scalar_lea.vmem %s206, 16 [#allocation2]
        %618 = vst.msk [vmem:[%s617] sm:$0xff] %vm473, %v614
        %619 = vmatprep.subr.mxu0 0.0
        %620 = vmatpush1.msra.mxu0 %v371
        %621 = vmatprep.subr.mxu0 0.0
        %622 = vmatpush1.msra.mxu0 %v376
        %623 = vmatprep.subr.mxu0 0.0
        %624 = vmatpush1.msra.mxu0 0.0
        %625 = vmatprep.subr.mxu0 0.0
        %626 = vmatpush1.msra.mxu0 0.0
        %627 = vmatprep.subr.mxu0 0.0
        %628 = vmatpush1.msra.mxu0 0.0
        %629 = vmatprep.subr.mxu0 0.0
        %630 = vmatpush1.msra.mxu0 0.0
        %631 = vmatprep.subr.mxu0 0.0
        %632 = vmatpush1.msra.mxu0 0.0
        %633 = vmatprep.subr.mxu0 0.0
        %634 = vmatpush1.msra.mxu0 0.0
        %635 = vmatprep.subr.mxu0 0.0
        %636 = vmatpush1.msra.mxu0 0.0
        %637 = vmatprep.subr.mxu0 0.0
        %638 = vmatpush1.msra.mxu0 0.0
        %639 = vmatprep.subr.mxu0 0.0
        %640 = vmatpush1.msra.mxu0 0.0
        %641 = vmatprep.subr.mxu0 0.0
        %642 = vmatpush1.msra.mxu0 0.0
        %643 = vmatprep.subr.mxu0 0.0
        %644 = vmatpush1.msra.mxu0 0.0
        %645 = vmatprep.subr.mxu0 0.0
        %646 = vmatpush1.msra.mxu0 0.0
        %647 = vmatprep.subr.mxu0 0.0
        %648 = vmatpush1.msra.mxu0 0.0
        %649 = vmatprep.subr.mxu0 0.0
        %650 = vmatpush1.msra.mxu0 0.0
        %651 = vmatprep.subr.mxu0 0.0
        %652 = vmatpush1.msra.mxu0 0.0
        %653 = vmatprep.subr.mxu0 0.0
        %654 = vmatpush1.msra.mxu0 0.0
        %655 = vmatprep.subr.mxu0 0.0
        %656 = vmatpush1.msra.mxu0 0.0
        %657 = vmatprep.subr.mxu0 0.0
        %658 = vmatpush1.msra.mxu0 0.0
        %659 = vmatprep.subr.mxu0 0.0
        %660 = vmatpush1.msra.mxu0 0.0
        %661 = vmatprep.subr.mxu0 0.0
        %662 = vmatpush1.msra.mxu0 0.0
        %663 = vmatprep.subr.mxu0 0.0
        %664 = vmatpush1.msra.mxu0 0.0
        %665 = vmatprep.subr.mxu0 0.0
        %666 = vmatpush1.msra.mxu0 0.0
        %667 = vmatprep.subr.mxu0 0.0
        %668 = vmatpush1.msra.mxu0 0.0
        %669 = vmatprep.subr.mxu0 0.0
        %670 = vmatpush1.msra.mxu0 0.0
        %671 = vmatprep.subr.mxu0 0.0
        %672 = vmatpush1.msra.mxu0 0.0
        %673 = vmatprep.subr.mxu0 0.0
        %674 = vmatpush1.msra.mxu0 0.0
        %675 = vmatprep.subr.mxu0 0.0
        %676 = vmatpush1.msra.mxu0 0.0
        %677 = vmatprep.subr.mxu0 0.0
        %678 = vmatpush1.msra.mxu0 0.0
        %679 = vmatprep.subr.mxu0 0.0
        %680 = vmatpush1.msra.mxu0 0.0
        %681 = vmatprep.subr.mxu0 0.0
        %682 = vmatpush1.msra.mxu0 0.0
        %683 = vmatprep.mubr.f32.mxu0 0.0
        %684 = vmatmul.mubr.f32.gmra.mrb[0].mxu0 %v401
        %v685 = vpop.f32.mrb[0].mxu0
        %v686 = vadd.f32 0.0, %v685
        %v687 = vpop.f32.mrb[0].mxu0
        %688 = vdwg.mxu0
        %s689 = scalar_lea.vmem %s206, 24 [#allocation2]
        %690 = vst.msk [vmem:[%s689] sm:$0xff] %vm473, %v686
        %691 = vmatprep.subr.mxu0 0.0
        %692 = vmatpush1.msra.mxu0 %v381
        %693 = vmatprep.subr.mxu0 0.0
        %694 = vmatpush1.msra.mxu0 %v386
        %695 = vmatprep.subr.mxu0 0.0
        %696 = vmatpush1.msra.mxu0 0.0
        %697 = vmatprep.subr.mxu0 0.0
        %698 = vmatpush1.msra.mxu0 0.0
        %699 = vmatprep.subr.mxu0 0.0
        %700 = vmatpush1.msra.mxu0 0.0
        %701 = vmatprep.subr.mxu0 0.0
        %702 = vmatpush1.msra.mxu0 0.0
        %703 = vmatprep.subr.mxu0 0.0
        %704 = vmatpush1.msra.mxu0 0.0
        %705 = vmatprep.subr.mxu0 0.0
        %706 = vmatpush1.msra.mxu0 0.0
        %707 = vmatprep.subr.mxu0 0.0
        %708 = vmatpush1.msra.mxu0 0.0
        %709 = vmatprep.subr.mxu0 0.0
        %710 = vmatpush1.msra.mxu0 0.0
        %711 = vmatprep.subr.mxu0 0.0
        %712 = vmatpush1.msra.mxu0 0.0
        %713 = vmatprep.subr.mxu0 0.0
        %714 = vmatpush1.msra.mxu0 0.0
        %715 = vmatprep.subr.mxu0 0.0
        %716 = vmatpush1.msra.mxu0 0.0
        %717 = vmatprep.subr.mxu0 0.0
        %718 = vmatpush1.msra.mxu0 0.0
        %719 = vmatprep.subr.mxu0 0.0
        %720 = vmatpush1.msra.mxu0 0.0
        %721 = vmatprep.subr.mxu0 0.0
        %722 = vmatpush1.msra.mxu0 0.0
        %723 = vmatprep.subr.mxu0 0.0
        %724 = vmatpush1.msra.mxu0 0.0
        %725 = vmatprep.subr.mxu0 0.0
        %726 = vmatpush1.msra.mxu0 0.0
        %727 = vmatprep.subr.mxu0 0.0
        %728 = vmatpush1.msra.mxu0 0.0
        %729 = vmatprep.subr.mxu0 0.0
        %730 = vmatpush1.msra.mxu0 0.0
        %731 = vmatprep.subr.mxu0 0.0
        %732 = vmatpush1.msra.mxu0 0.0
        %733 = vmatprep.subr.mxu0 0.0
        %734 = vmatpush1.msra.mxu0 0.0
        %735 = vmatprep.subr.mxu0 0.0
        %736 = vmatpush1.msra.mxu0 0.0
        %737 = vmatprep.subr.mxu0 0.0
        %738 = vmatpush1.msra.mxu0 0.0
        %739 = vmatprep.subr.mxu0 0.0
        %740 = vmatpush1.msra.mxu0 0.0
        %741 = vmatprep.subr.mxu0 0.0
        %742 = vmatpush1.msra.mxu0 0.0
        %743 = vmatprep.subr.mxu0 0.0
        %744 = vmatpush1.msra.mxu0 0.0
        %745 = vmatprep.subr.mxu0 0.0
        %746 = vmatpush1.msra.mxu0 0.0
        %747 = vmatprep.subr.mxu0 0.0
        %748 = vmatpush1.msra.mxu0 0.0
        %749 = vmatprep.subr.mxu0 0.0
        %750 = vmatpush1.msra.mxu0 0.0
        %751 = vmatprep.subr.mxu0 0.0
        %752 = vmatpush1.msra.mxu0 0.0
        %753 = vmatprep.subr.mxu0 0.0
        %754 = vmatpush1.msra.mxu0 0.0
        %755 = vmatprep.mubr.f32.mxu0 0.0
        %756 = vmatmul.mubr.f32.gmra.mrb[0].mxu0 %v401
        %v757 = vpop.f32.mrb[0].mxu0
        %v758 = vadd.f32 0.0, %v757
        %v759 = vpop.f32.mrb[0].mxu0
        %760 = vdwg.mxu0
        %s761 = scalar_lea.vmem %s206, 32 [#allocation2]
        %762 = vst.msk [vmem:[%s761] sm:$0xff] %vm473, %v758
        %763 = vmatprep.subr.mxu0 0.0
        %764 = vmatpush1.msra.mxu0 %v391
        %765 = vmatprep.subr.mxu0 0.0
        %766 = vmatpush1.msra.mxu0 %v396
        %767 = vmatprep.subr.mxu0 0.0
        %768 = vmatpush1.msra.mxu0 0.0
        %769 = vmatprep.subr.mxu0 0.0
        %770 = vmatpush1.msra.mxu0 0.0
        %771 = vmatprep.subr.mxu0 0.0
        %772 = vmatpush1.msra.mxu0 0.0
        %773 = vmatprep.subr.mxu0 0.0
        %774 = vmatpush1.msra.mxu0 0.0
        %775 = vmatprep.subr.mxu0 0.0
        %776 = vmatpush1.msra.mxu0 0.0
        %777 = vmatprep.subr.mxu0 0.0
        %778 = vmatpush1.msra.mxu0 0.0
        %779 = vmatprep.subr.mxu0 0.0
        %780 = vmatpush1.msra.mxu0 0.0
        %781 = vmatprep.subr.mxu0 0.0
        %782 = vmatpush1.msra.mxu0 0.0
        %783 = vmatprep.subr.mxu0 0.0
        %784 = vmatpush1.msra.mxu0 0.0
        %785 = vmatprep.subr.mxu0 0.0
        %786 = vmatpush1.msra.mxu0 0.0
        %787 = vmatprep.subr.mxu0 0.0
        %788 = vmatpush1.msra.mxu0 0.0
        %789 = vmatprep.subr.mxu0 0.0
        %790 = vmatpush1.msra.mxu0 0.0
        %791 = vmatprep.subr.mxu0 0.0
        %792 = vmatpush1.msra.mxu0 0.0
        %793 = vmatprep.subr.mxu0 0.0
        %794 = vmatpush1.msra.mxu0 0.0
        %795 = vmatprep.subr.mxu0 0.0
        %796 = vmatpush1.msra.mxu0 0.0
        %797 = vmatprep.subr.mxu0 0.0
        %798 = vmatpush1.msra.mxu0 0.0
        %799 = vmatprep.subr.mxu0 0.0
        %800 = vmatpush1.msra.mxu0 0.0
        %801 = vmatprep.subr.mxu0 0.0
        %802 = vmatpush1.msra.mxu0 0.0
        %803 = vmatprep.subr.mxu0 0.0
        %804 = vmatpush1.msra.mxu0 0.0
        %805 = vmatprep.subr.mxu0 0.0
        %806 = vmatpush1.msra.mxu0 0.0
        %807 = vmatprep.subr.mxu0 0.0
        %808 = vmatpush1.msra.mxu0 0.0
        %809 = vmatprep.subr.mxu0 0.0
        %810 = vmatpush1.msra.mxu0 0.0
        %811 = vmatprep.subr.mxu0 0.0
        %812 = vmatpush1.msra.mxu0 0.0
        %813 = vmatprep.subr.mxu0 0.0
        %814 = vmatpush1.msra.mxu0 0.0
        %815 = vmatprep.subr.mxu0 0.0
        %816 = vmatpush1.msra.mxu0 0.0
        %817 = vmatprep.subr.mxu0 0.0
        %818 = vmatpush1.msra.mxu0 0.0
        %819 = vmatprep.subr.mxu0 0.0
        %820 = vmatpush1.msra.mxu0 0.0
        %821 = vmatprep.subr.mxu0 0.0
        %822 = vmatpush1.msra.mxu0 0.0
        %823 = vmatprep.subr.mxu0 0.0
        %824 = vmatpush1.msra.mxu0 0.0
        %825 = vmatprep.subr.mxu0 0.0
        %826 = vmatpush1.msra.mxu0 0.0
        %827 = vmatprep.mubr.f32.mxu0 0.0
        %828 = vmatmul.mubr.f32.gmra.mrb[0].mxu0 %v401
        %v829 = vpop.f32.mrb[0].mxu0
        %v830 = vadd.f32 0.0, %v829
        %v831 = vpop.f32.mrb[0].mxu0
        %832 = vdwg.mxu0
        %s833 = scalar_lea.vmem %s206, 40 [#allocation2]
        %834 = vst.msk [vmem:[%s833] sm:$0xff] %vm473, %v830
        %s835 = sand.u32 %s117, 1
        %s836 = scalar_lea.sflag [#allocation3], %s835
        %s837 = sand.u32 %s117, 1
        %s838 = smul.addr %s837, 48
        %s839 = scalar_lea.vmem [#allocation2], %s838
        // Predicated region
        $region33: #{tpu_custom_call.1} parent=31 // pred_check
          %p840 = pneg %p127
        $region34: #{tpu_custom_call.1} parent=31 // pred_check_branch
          %842 = sbr.rel (%p840) target = $region36
        $region35: #{tpu_custom_call.1} parent=31 // pred_region
          %s843 = smul.u32 6, %s21
          %s845 = ssub.s32 768, 768
          %846 = vsyncadd %s836, %s845
          %s847 = smul.addr %s22, 6
          %s848 = sadd.s32 %s843, %s847
          %s849 = smul.addr %s848, 128
          %s850 = scalar_lea.hbm %s3, %s849
          %s851 = sshll.u32 %s839, 4
          %s852 = int_to_ptr.vmem [resolvable:$true] %s851
          %857 = dma.vmem_to_hbm [thread:$0]  %s852, 768, %s850, %s836, 128, 128, 8
        $region36: #{tpu_custom_call.1} parent=31 // pred_fallthru
          _
      $region32: #{tpu_custom_call.1} parent=5 // pred_fallthru
        _
      %p858 = scmp.le.s32.totalorder 2, %s12
      // Predicated region
      $region37: #{tpu_custom_call.1} parent=5 // pred_check
        %p859 = pneg %p858
      $region38: #{tpu_custom_call.1} parent=5 // pred_check_branch
        %861 = sbr.rel (%p859) target = $region40
      $region39: #{tpu_custom_call.1} parent=5 // pred_region
        %s862 = ssub.s32 %s12, 2
        // Predicated region
        $region41: #{tpu_custom_call.1} parent=39 // pred_check
          %p863 = pneg %p133
        $region42: #{tpu_custom_call.1} parent=39 // pred_check_branch
          %865 = sbr.rel (%p863) target = $region44
        $region43: #{tpu_custom_call.1} parent=39 // pred_region
          %s866 = sand.u32 %s118, 1
          %s867 = scalar_lea.sflag [#allocation3], %s866
          %s868 = sand.u32 %s118, 1
          %s869 = smul.addr %s868, 48
          %s870 = scalar_lea.vmem [#allocation2], %s869
          %871 = dma.done %s867, 768
        $region44: #{tpu_custom_call.1} parent=39 // pred_fallthru
          _
      $region40: #{tpu_custom_call.1} parent=5 // pred_fallthru
        _
    $region6: #{tpu_custom_call.1} parent=1 // loop_footer
      %s16 = sadd.s32 1, %s12
    $region7: #{tpu_custom_call.1} parent=1 // loop_footer_branch
      %11 = sbr.rel target = $region3
    $region8: #{tpu_custom_call.1} parent=1 // loop_exit
      _
    %872 = vsyncpa [#allocation3], 1
    %s873 = scalar_lea.sflag [#allocation3], 1
    %874 = vsyncpa %s873, 1

</llo_original>
